<compile_context>
chip_gen: v6e
topology: v6e:2x2x1
jax: 0.10.0
libtpu: 0.0.40
codegen_flags: <defaults>
</compile_context>

<pallas_src>
import math

import jax
import jax.numpy as jnp
from jax.experimental import pallas as pl
from jax.experimental.pallas import tpu as pltpu


def feature_regression_kernel(x_ref, w_ref, b_ref, o_ref, acc_ref):
    j = pl.program_id(1)           # output-feature (W-row) tile index
    k = pl.program_id(2)           # reduction (W-col / input-feature) tile index
    nk = pl.num_programs(2)

    @pl.when(k == 0)
    def _init():
        acc_ref[...] = jnp.zeros_like(acc_ref)

    def _accum(w):
        # x: (tm, tk), w: (tn, tk) -> contract both last axes == x @ w.T
        acc_ref[...] += jax.lax.dot_general(
            x_ref[...], w,
            dimension_numbers=(((1,), (1,)), ((), ())),
            preferred_element_type=jnp.float32)

    # With tn == tk, W's diagonal only lives on tiles where j == k.
    @pl.when(j == k)
    def _diag_tile():
        w = w_ref[...]
        r = jax.lax.broadcasted_iota(jnp.int32, w.shape, 0)
        c = jax.lax.broadcasted_iota(jnp.int32, w.shape, 1)
        _accum(jnp.where(r == c, jnp.zeros_like(w), w))

    @pl.when(j != k)
    def _off_diag_tile():
        _accum(w_ref[...])

    @pl.when(k == nk - 1)
    def _finalize():
        # b_ref is already f32 (cast hoisted to the wrapper).
        o_ref[...] = (acc_ref[...] + b_ref[...]).astype(o_ref.dtype)


def _pick_tile(dim, candidates=(256, 128)):
    for c in candidates:
        if dim >= c and dim % c == 0:
            return c
    return dim  # small / non-divisible dims: single full-extent block


def feature_regression(x, W, b, *, tile_m=None, tile_n=None):
    """x: (B, N), W: (N, N), b: (N,) -> (B, N) = x @ (W with zero diag).T + b."""
    B, N = x.shape
    assert W.shape == (N, N) and b.shape == (N,)

    tm = tile_m if tile_m is not None else _pick_tile(B)
    tn = tile_n if tile_n is not None else _pick_tile(N)
    tk = tn  # equal row/col tiles => the diagonal only lives on (j == k) tiles
    assert B % tm == 0 and N % tn == 0

    b2d = b.astype(jnp.float32).reshape(1, N)  # f32 once, outside the kernel

    grid = (B // tm, N // tn, N // tk)
    itemsize = x.dtype.itemsize
    cost = pl.CostEstimate(
        flops=2 * B * N * N,
        transcendentals=0,
        bytes_accessed=(x.size * itemsize + W.size * W.dtype.itemsize
                        + b2d.size * 4 + B * N * itemsize))

    return pl.pallas_call(
        feature_regression_kernel,
        out_shape=jax.ShapeDtypeStruct((B, N), x.dtype),
        grid_spec=pltpu.PrefetchScalarGridSpec(
            num_scalar_prefetch=0,
            grid=grid,
            in_specs=[
                pl.BlockSpec((tm, tk), lambda i, j, k: (i, k)),   # x
                pl.BlockSpec((tn, tk), lambda i, j, k: (j, k)),   # W
                pl.BlockSpec((1, tn), lambda i, j, k: (0, j)),    # bias (f32)
            ],
            out_specs=pl.BlockSpec((tm, tn), lambda i, j, k: (i, j)),
            scratch_shapes=[pltpu.VMEM((tm, tn), jnp.float32)],
        ),
        compiler_params=pltpu.CompilerParams(
            dimension_semantics=("parallel", "parallel", "arbitrary")),
        cost_estimate=cost,
    )(x, W, b2d)


if __name__ == "__main__":
    def ref_fn(x, W, b):
        N = W.shape[0]
        m = jnp.ones((N, N), W.dtype) - jnp.eye(N, dtype=W.dtype)
        return x @ (W * m).T + b

    key = jax.random.PRNGKey(0)

    # --- test 1: module-sized problem (single-block path) ---
    batch, input_size = 8, 32
    k1, k2, k3, key = jax.random.split(key, 4)
    stdv = 1.0 / math.sqrt(input_size)
    W = jax.random.uniform(k1, (input_size, input_size), jnp.float32, -stdv, stdv)
    b = jax.random.uniform(k2, (input_size,), jnp.float32, -stdv, stdv)
    x = jax.random.normal(k3, (batch, input_size), jnp.float32)

    out = feature_regression(x, W, b)
    jax.block_until_ready(out)
    assert out.shape == (batch, input_size)
    assert jnp.allclose(out, ref_fn(x, W, b), atol=1e-4, rtol=1e-4), \
        "mismatch vs reference (small path)"

    # --- test 2: exercise the tiled (multi-block, K-reduction) path ---
    batch2, n2 = 16, 256
    k4, k5, k6 = jax.random.split(key, 3)
    stdv2 = 1.0 / math.sqrt(n2)
    W2 = jax.random.uniform(k4, (n2, n2), jnp.float32, -stdv2, stdv2)
    b2 = jax.random.uniform(k5, (n2,), jnp.float32, -stdv2, stdv2)
    x2 = jax.random.normal(k6, (batch2, n2), jnp.float32)

    out2 = feature_regression(x2, W2, b2, tile_n=128)  # grid (1, 2, 2)
    jax.block_until_ready(out2)
    assert out2.shape == (batch2, n2)
    assert jnp.allclose(out2, ref_fn(x2, W2, b2), atol=1e-4, rtol=1e-4), \
        "mismatch vs reference (tiled path)"

    print("KERNEL_OK")
</pallas_src>

<mosaic_0001>
module attributes {stable_mosaic.version = 11 : i64} {
  func.func @feature_regression_kernel(%arg0: i32, %arg1: i32, %arg2: i32, %arg3: memref<8x32xf32, #tpu.memory_space<vmem>>, %arg4: memref<32x32xf32, #tpu.memory_space<vmem>>, %arg5: memref<1x32xf32, #tpu.memory_space<vmem>>, %arg6: memref<8x32xf32, #tpu.memory_space<vmem>>, %arg7: memref<8x32xf32, #tpu.memory_space<vmem>>) attributes {dimension_semantics = [#tpu.dimension_semantics<parallel>, #tpu.dimension_semantics<parallel>, #tpu.dimension_semantics<arbitrary>], iteration_bounds = array<i64: 1, 1, 1>, scalar_prefetch = 0 : i64, scratch_operands = 1 : i64, tpu.core_type = #tpu.core_type<tc>, window_params = [{transform_indices = @transform_0, window_bounds = array<i64: 8, 32>}, {transform_indices = @transform_1, window_bounds = array<i64: 32, 32>}, {transform_indices = @transform_2, window_bounds = array<i64: 1, 32>}, {transform_indices = @transform_3, window_bounds = array<i64: 8, 32>}]} {
    %c0_i32 = arith.constant 0 : i32
    %0 = arith.cmpi eq, %arg2, %c0_i32 : i32
    %1 = arith.extui %0 : i1 to i32
    %c0_i32_0 = arith.constant 0 : i32
    %2 = arith.cmpi ne, %1, %c0_i32_0 : i32
    scf.if %2 {
      %cst = arith.constant 0.000000e+00 : f32
      %12 = vector.broadcast %cst : f32 to vector<8x32xf32>
      %c0 = arith.constant 0 : index
      %c0_5 = arith.constant 0 : index
      %13 = vector.load %arg7[%c0, %c0_5] : memref<8x32xf32, #tpu.memory_space<vmem>>, vector<8x32xf32>
      tpu.vector_store %arg7[%c0, %c0_5], %12 {strides = array<i32>} : memref<8x32xf32, #tpu.memory_space<vmem>>, vector<8x32xf32>,
    } else {
    }
    %3 = arith.cmpi eq, %arg1, %arg2 : i32
    %4 = arith.extui %3 : i1 to i32
    %c0_i32_1 = arith.constant 0 : i32
    %5 = arith.cmpi ne, %4, %c0_i32_1 : i32
    scf.if %5 {
      %c0 = arith.constant 0 : index
      %c0_5 = arith.constant 0 : index
      %12 = vector.load %arg4[%c0, %c0_5] : memref<32x32xf32, #tpu.memory_space<vmem>>, vector<32x32xf32>
      %13 = tpu.iota {dimensions = array<i32: 0>} : vector<32x32xi32>
      %14 = tpu.iota {dimensions = array<i32: 1>} : vector<32x32xi32>
      %15 = arith.cmpi eq, %13, %14 : vector<32x32xi32>
      %cst = arith.constant 0.000000e+00 : f32
      %16 = vector.broadcast %cst : f32 to vector<32x32xf32>
      %17 = arith.select %15, %16, %12 : vector<32x32xi1>, vector<32x32xf32>
      %c0_6 = arith.constant 0 : index
      %c0_7 = arith.constant 0 : index
      %18 = vector.load %arg7[%c0_6, %c0_7] : memref<8x32xf32, #tpu.memory_space<vmem>>, vector<8x32xf32>
      %c0_8 = arith.constant 0 : index
      %c0_9 = arith.constant 0 : index
      %19 = vector.load %arg3[%c0_8, %c0_9] : memref<8x32xf32, #tpu.memory_space<vmem>>, vector<8x32xf32>
      %cst_10 = arith.constant dense<0.000000e+00> : vector<8x32xf32>
      %20 = tpu.matmul %19, %17, %cst_10 {dimension_numbers = #tpu.dot_dimension_numbers<[1], [1], [0], [0], [0, 0, 1, 0], [], []>} : vector<8x32xf32>, vector<32x32xf32>, vector<8x32xf32> -> vector<8x32xf32>
      %21 = arith.addf %18, %20 : vector<8x32xf32>
      %c0_11 = arith.constant 0 : index
      %c0_12 = arith.constant 0 : index
      %22 = vector.load %arg7[%c0_11, %c0_12] : memref<8x32xf32, #tpu.memory_space<vmem>>, vector<8x32xf32>
      tpu.vector_store %arg7[%c0_11, %c0_12], %21 {strides = array<i32>} : memref<8x32xf32, #tpu.memory_space<vmem>>, vector<8x32xf32>,
    } else {
    }
    %6 = arith.cmpi ne, %arg1, %arg2 : i32
    %7 = arith.extui %6 : i1 to i32
    %c0_i32_2 = arith.constant 0 : i32
    %8 = arith.cmpi ne, %7, %c0_i32_2 : i32
    scf.if %8 {
      %c0 = arith.constant 0 : index
      %c0_5 = arith.constant 0 : index
      %12 = vector.load %arg4[%c0, %c0_5] : memref<32x32xf32, #tpu.memory_space<vmem>>, vector<32x32xf32>
      %c0_6 = arith.constant 0 : index
      %c0_7 = arith.constant 0 : index
      %13 = vector.load %arg7[%c0_6, %c0_7] : memref<8x32xf32, #tpu.memory_space<vmem>>, vector<8x32xf32>
      %c0_8 = arith.constant 0 : index
      %c0_9 = arith.constant 0 : index
      %14 = vector.load %arg3[%c0_8, %c0_9] : memref<8x32xf32, #tpu.memory_space<vmem>>, vector<8x32xf32>
      %cst = arith.constant dense<0.000000e+00> : vector<8x32xf32>
      %15 = tpu.matmul %14, %12, %cst {dimension_numbers = #tpu.dot_dimension_numbers<[1], [1], [0], [0], [0, 0, 1, 0], [], []>} : vector<8x32xf32>, vector<32x32xf32>, vector<8x32xf32> -> vector<8x32xf32>
      %16 = arith.addf %13, %15 : vector<8x32xf32>
      %c0_10 = arith.constant 0 : index
      %c0_11 = arith.constant 0 : index
      %17 = vector.load %arg7[%c0_10, %c0_11] : memref<8x32xf32, #tpu.memory_space<vmem>>, vector<8x32xf32>
      tpu.vector_store %arg7[%c0_10, %c0_11], %16 {strides = array<i32>} : memref<8x32xf32, #tpu.memory_space<vmem>>, vector<8x32xf32>,
    } else {
    }
    %c0_i32_3 = arith.constant 0 : i32
    %9 = arith.cmpi eq, %arg2, %c0_i32_3 : i32
    %10 = arith.extui %9 : i1 to i32
    %c0_i32_4 = arith.constant 0 : i32
    %11 = arith.cmpi ne, %10, %c0_i32_4 : i32
    scf.if %11 {
      %c0 = arith.constant 0 : index
      %c0_5 = arith.constant 0 : index
      %12 = vector.load %arg7[%c0, %c0_5] : memref<8x32xf32, #tpu.memory_space<vmem>>, vector<8x32xf32>
      %c0_6 = arith.constant 0 : index
      %c0_7 = arith.constant 0 : index
      %13 = vector.load %arg5[%c0_6, %c0_7] : memref<1x32xf32, #tpu.memory_space<vmem>>, vector<1x32xf32>
      %14 = vector.broadcast %13 : vector<1x32xf32> to vector<8x32xf32>
      %15 = arith.addf %12, %14 : vector<8x32xf32>
      %c0_8 = arith.constant 0 : index
      %c0_9 = arith.constant 0 : index
      %16 = vector.load %arg6[%c0_8, %c0_9] : memref<8x32xf32, #tpu.memory_space<vmem>>, vector<8x32xf32>
      tpu.vector_store %arg6[%c0_8, %c0_9], %15 {strides = array<i32>} : memref<8x32xf32, #tpu.memory_space<vmem>>, vector<8x32xf32>,
    } else {
    }
    return
  }
  func.func @transform_0(%arg0: i32, %arg1: i32, %arg2: i32) -> (i32, i32) {
    %c0_i32 = arith.constant 0 : i32
    return %arg0, %arg2 : i32, i32
  }
  func.func @transform_1(%arg0: i32, %arg1: i32, %arg2: i32) -> (i32, i32) {
    %c0_i32 = arith.constant 0 : i32
    return %arg1, %arg2 : i32, i32
  }
  func.func @transform_2(%arg0: i32, %arg1: i32, %arg2: i32) -> (i32, i32) {
    %c0_i32 = arith.constant 0 : i32
    %c0_i32_0 = arith.constant 0 : i32
    return %c0_i32, %arg1 : i32, i32
  }
  func.func @transform_3(%arg0: i32, %arg1: i32, %arg2: i32) -> (i32, i32) {
    %c0_i32 = arith.constant 0 : i32
    return %arg0, %arg1 : i32, i32
  }
}

</mosaic_0001>

<llo_original>
// kernel: tpu_custom_call.1
$region0: #{tpu_custom_call.1}
  #allocation0 [shape = 'u32[]', space=smem, size = 0x4, offset = 0x4, fixed_abs, tag = 'smem constant byte address 0x4 - core index']
  #allocation1 [shape = 'u32[144,128]{1,0:T(1,128)}', space=vmem, size = 0x12000, scoped, tag = 'internal scratch']
  #allocation2 [shape = 'f32[8,32]{1,0:T(8,128)}', space=vmem, size = 0x1000, scoped, tag = 'scratch operand']
  %s0 = inlined_call_operand.hbm [shape: f32[8,32], index: 0, kind: input, shape index: {}]
  %s1 = inlined_call_operand.hbm [shape: f32[32,32], index: 1, kind: input, shape index: {}]
  %s2 = inlined_call_operand.vmem [shape: f32[1,32], index: 2, kind: input, shape index: {}]
  %s3 = inlined_call_operand.hbm [shape: f32[8,32], index: 3, kind: output, shape index: {}]
  %s4 = sld [smem:[#allocation0]]
  $region46: #{tpu_custom_call.1} parent=0
    _
  %s6 = ssub.s32 1, %s4
  %s7 = scalar_select 0, %s6, %s4
  $region1: #{tpu_custom_call.1} parent=0
    #allocation3 [shape = 'u8[4096]{0}', space=vmem, size = 0x1000, scoped, tag = 'input window, operand 0, single buffered']
    #allocation4 [shape = 's32[1]{0}', space=sflag, size = 0x4, scoped, tag = 'scoped memory for tpu_custom_call.1']
    #allocation5 [shape = 's32[1]{0}', space=sflag, size = 0x4, scoped, tag = 'scoped memory for tpu_custom_call.1']
    #allocation6 [shape = 'u8[16384]{0}', space=vmem, size = 0x4000, scoped, tag = 'input window, operand 1, single buffered']
    #allocation7 [shape = 's32[1]{0}', space=sflag, size = 0x4, scoped, tag = 'scoped memory for tpu_custom_call.1']
    #allocation8 [shape = 'u8[4096]{0}', space=vmem, size = 0x1000, scoped, tag = 'output window, operand 0, single buffered']
    %8 = vsyncpa [#allocation4], 0
    %9 = vsyncpa [#allocation7], 0
    %10 = vsyncpa [#allocation5], 0
    // Predicated region
    $region2: #{tpu_custom_call.1} parent=1 // pred_check
      _
    $region3: #{tpu_custom_call.1} parent=1 // pred_check_branch
      %12 = sbr.rel (0) target = $region5
    $region4: #{tpu_custom_call.1} parent=1 // pred_region
      %s14 = ssub.s32 128, 128
      %15 = vsyncadd [#allocation4], %s14
      %s17 = sshll.u32 [#allocation3], 4
      %s18 = int_to_ptr.vmem [resolvable:$true] %s17
      %20 = dma.hbm_to_vmem [thread:$0]  %s0, 128, %s18, [#allocation4]
    $region5: #{tpu_custom_call.1} parent=1 // pred_fallthru
      _
    // Predicated region
    $region6: #{tpu_custom_call.1} parent=1 // pred_check
      _
    $region7: #{tpu_custom_call.1} parent=1 // pred_check_branch
      %22 = sbr.rel (0) target = $region9
    $region8: #{tpu_custom_call.1} parent=1 // pred_region
      %s24 = ssub.s32 512, 512
      %25 = vsyncadd [#allocation7], %s24
      %s26 = sshll.u32 [#allocation6], 4
      %s27 = int_to_ptr.vmem [resolvable:$true] %s26
      %32 = dma.hbm_to_vmem [thread:$0]  %s1, 512, %s27, [#allocation7], 128, 128, 8
    $region9: #{tpu_custom_call.1} parent=1 // pred_fallthru
      _
    // Predicated region
    $region10: #{tpu_custom_call.1} parent=1 // pred_check
      _
    $region11: #{tpu_custom_call.1} parent=1 // pred_check_branch
      %34 = sbr.rel (0) target = $region13
    $region12: #{tpu_custom_call.1} parent=1 // pred_region
      _
    $region13: #{tpu_custom_call.1} parent=1 // pred_fallthru
      _
    // Predicated region
    $region14: #{tpu_custom_call.1} parent=1 // pred_check
      _
    $region15: #{tpu_custom_call.1} parent=1 // pred_check_branch
      %36 = sbr.rel (0) target = $region17
    $region16: #{tpu_custom_call.1} parent=1 // pred_region
      %37 = dma.done [#allocation4], 128
    $region17: #{tpu_custom_call.1} parent=1 // pred_fallthru
      _
    // Predicated region
    $region18: #{tpu_custom_call.1} parent=1 // pred_check
      _
    $region19: #{tpu_custom_call.1} parent=1 // pred_check_branch
      %39 = sbr.rel (0) target = $region21
    $region20: #{tpu_custom_call.1} parent=1 // pred_region
      %40 = dma.done [#allocation7], 512
    $region21: #{tpu_custom_call.1} parent=1 // pred_fallthru
      _
    %p41 = scmp.eq.s32.totalorder 0, 0
    // Predicated region
    $region22: #{tpu_custom_call.1} parent=1 // pred_check
      %p42 = pneg %p41
    $region23: #{tpu_custom_call.1} parent=1 // pred_check_branch
      %44 = sbr.rel (%p42) target = $region25
    $region24: #{tpu_custom_call.1} parent=1 // pred_region
      %vm45 = vcmask 261120
      %46 = vst.msk [vmem:[#allocation2] sm:$0xff] %vm45, 0.0
    $region25: #{tpu_custom_call.1} parent=1 // pred_fallthru
      _
    %p47 = scmp.eq.s32.totalorder 0, 0
    // Predicated region
    $region26: #{tpu_custom_call.1} parent=1 // pred_check
      %p48 = pneg %p47
    $region27: #{tpu_custom_call.1} parent=1 // pred_check_branch
      %50 = sbr.rel (%p48) target = $region29
    $region28: #{tpu_custom_call.1} parent=1 // pred_region
      %v51 = vld [vmem:[#allocation6] sm:$0xff]
      %v52 = vld [vmem:[#allocation6 + $0x8] sm:$0xff]
      %v53 = vld [vmem:[#allocation6 + $0x10] sm:$0xff]
      %v54 = vld [vmem:[#allocation6 + $0x18] sm:$0xff]
      %v55 = vlaneseq
      %v56 = vshrl.u32 %v55, 7
      %v57 = vadd.s32 %v56, 8
      %v58 = vadd.s32 %v56, 16
      %v59 = vadd.s32 %v56, 24
      %v60 = vlaneseq
      %v61 = vand.u32 %v60, 127
      %vm62 = vcmp.eq.s32.totalorder %v56, %v61
      %vm63 = vcmp.eq.s32.totalorder %v57, %v61
      %vm64 = vcmp.eq.s32.totalorder %v58, %v61
      %vm65 = vcmp.eq.s32.totalorder %v59, %v61
      %v66 = vsel %vm62, 0.0, %v51
      %v67 = vsel %vm63, 0.0, %v52
      %v68 = vsel %vm64, 0.0, %v53
      %v69 = vsel %vm65, 0.0, %v54
      %v70 = vld [vmem:[#allocation2] sm:$0xff]
      %v71 = vld [vmem:[#allocation3] sm:$0xff]
      %vm72 = vcmask 261120
      %v74 = vsel %vm72, %v71, 0
      %v77 = vsel %vm72, %v66, 0
      %v80 = vsel %vm72, %v67, 0
      %v83 = vsel %vm72, %v68, 0
      %v86 = vsel %vm72, %v69, 0
      %88 = vmatprep.subr.mxu0 0.0
      %89 = vmatpush1.xpose.msra.mxu0 0.0
      %90 = vmatprep.subr.mxu0 0.0
      %91 = vmatpush1.xpose.msra.mxu0 0.0
      %92 = vmatprep.subr.mxu0 0.0
      %93 = vmatpush1.xpose.msra.mxu0 0.0
      %94 = vmatprep.subr.mxu0 0.0
      %95 = vmatpush1.xpose.msra.mxu0 0.0
      %96 = vmatprep.subr.mxu0 0.0
      %97 = vmatpush1.xpose.msra.mxu0 0.0
      %98 = vmatprep.subr.mxu0 0.0
      %99 = vmatpush1.xpose.msra.mxu0 0.0
      %100 = vmatprep.subr.mxu0 0.0
      %101 = vmatpush1.xpose.msra.mxu0 0.0
      %102 = vmatprep.subr.mxu0 0.0
      %103 = vmatpush1.xpose.msra.mxu0 0.0
      %104 = vmatprep.subr.mxu0 0.0
      %105 = vmatpush1.xpose.msra.mxu0 0.0
      %106 = vmatprep.subr.mxu0 0.0
      %107 = vmatpush1.xpose.msra.mxu0 0.0
      %108 = vmatprep.subr.mxu0 0.0
      %109 = vmatpush1.xpose.msra.mxu0 0.0
      %110 = vmatprep.subr.mxu0 0.0
      %111 = vmatpush1.xpose.msra.mxu0 0.0
      %112 = vmatprep.subr.mxu0 0.0
      %113 = vmatpush1.xpose.msra.mxu0 %v86
      %114 = vmatprep.subr.mxu0 0.0
      %115 = vmatpush1.xpose.msra.mxu0 %v83
      %116 = vmatprep.subr.mxu0 0.0
      %117 = vmatpush1.xpose.msra.mxu0 %v80
      %118 = vmatprep.subr.mxu0 0.0
      %119 = vmatpush1.xpose.msra.mxu0 %v77
      %120 = vmatprep.subr.mxu0 0.0
      %121 = vmatpush2.xpose.msra.mxu0 0.0
      %122 = vmatprep.subr.mxu0 0.0
      %123 = vmatpush2.xpose.msra.mxu0 0.0
      %124 = vmatprep.subr.mxu0 0.0
      %125 = vmatpush2.xpose.msra.mxu0 0.0
      %126 = vmatprep.subr.mxu0 0.0
      %127 = vmatpush2.xpose.msra.mxu0 0.0
      %128 = vmatprep.subr.mxu0 0.0
      %129 = vmatpush2.xpose.msra.mxu0 0.0
      %130 = vmatprep.subr.mxu0 0.0
      %131 = vmatpush2.xpose.msra.mxu0 0.0
      %132 = vmatprep.subr.mxu0 0.0
      %133 = vmatpush2.xpose.msra.mxu0 0.0
      %134 = vmatprep.subr.mxu0 0.0
      %135 = vmatpush2.xpose.msra.mxu0 0.0
      %136 = vmatprep.subr.mxu0 0.0
      %137 = vmatpush2.xpose.msra.mxu0 0.0
      %138 = vmatprep.subr.mxu0 0.0
      %139 = vmatpush2.xpose.msra.mxu0 0.0
      %140 = vmatprep.subr.mxu0 0.0
      %141 = vmatpush2.xpose.msra.mxu0 0.0
      %142 = vmatprep.subr.mxu0 0.0
      %143 = vmatpush2.xpose.msra.mxu0 0.0
      %144 = vmatprep.subr.mxu0 0.0
      %145 = vmatpush2.xpose.msra.mxu0 0.0
      %146 = vmatprep.subr.mxu0 0.0
      %147 = vmatpush2.xpose.msra.mxu0 0.0
      %148 = vmatprep.subr.mxu0 0.0
      %149 = vmatpush2.xpose.msra.mxu0 0.0
      %150 = vmatprep.subr.mxu0 0.0
      %151 = vmatpush2.xpose.msra.mxu0 0.0
      %152 = vmatprep.mubr.f32.mxu0 0.0
      %153 = vmatmul.mubr.f32.gmra.mxu0 %v74
      %v154 = vpop.f32.mrf.mxu0
      %v155 = vadd.f32 0.0, %v154
      %v156 = vpop.f32.mrf.mxu0
      %157 = vdwg.mxu0
      %v158 = vadd.f32 %v70, %v155
      %159 = vst.msk [vmem:[#allocation2] sm:$0xff] %vm72, %v158
    $region29: #{tpu_custom_call.1} parent=1 // pred_fallthru
      _
    %p160 = scmp.ne.s32.totalorder 0, 0
    // Predicated region
    $region30: #{tpu_custom_call.1} parent=1 // pred_check
      %p161 = pneg %p160
    $region31: #{tpu_custom_call.1} parent=1 // pred_check_branch
      %163 = sbr.rel (%p161) target = $region33
    $region32: #{tpu_custom_call.1} parent=1 // pred_region
      %v164 = vld [vmem:[#allocation6] sm:$0xff]
      %v165 = vld [vmem:[#allocation6 + $0x8] sm:$0xff]
      %v166 = vld [vmem:[#allocation6 + $0x10] sm:$0xff]
      %v167 = vld [vmem:[#allocation6 + $0x18] sm:$0xff]
      %v168 = vld [vmem:[#allocation2] sm:$0xff]
      %v169 = vld [vmem:[#allocation3] sm:$0xff]
      %vm170 = vcmask 261120
      %v172 = vsel %vm170, %v169, 0
      %v175 = vsel %vm170, %v164, 0
      %v178 = vsel %vm170, %v165, 0
      %v181 = vsel %vm170, %v166, 0
      %v184 = vsel %vm170, %v167, 0
      %186 = vmatprep.subr.mxu0 0.0
      %187 = vmatpush1.xpose.msra.mxu0 0.0
      %188 = vmatprep.subr.mxu0 0.0
      %189 = vmatpush1.xpose.msra.mxu0 0.0
      %190 = vmatprep.subr.mxu0 0.0
      %191 = vmatpush1.xpose.msra.mxu0 0.0
      %192 = vmatprep.subr.mxu0 0.0
      %193 = vmatpush1.xpose.msra.mxu0 0.0
      %194 = vmatprep.subr.mxu0 0.0
      %195 = vmatpush1.xpose.msra.mxu0 0.0
      %196 = vmatprep.subr.mxu0 0.0
      %197 = vmatpush1.xpose.msra.mxu0 0.0
      %198 = vmatprep.subr.mxu0 0.0
      %199 = vmatpush1.xpose.msra.mxu0 0.0
      %200 = vmatprep.subr.mxu0 0.0
      %201 = vmatpush1.xpose.msra.mxu0 0.0
      %202 = vmatprep.subr.mxu0 0.0
      %203 = vmatpush1.xpose.msra.mxu0 0.0
      %204 = vmatprep.subr.mxu0 0.0
      %205 = vmatpush1.xpose.msra.mxu0 0.0
      %206 = vmatprep.subr.mxu0 0.0
      %207 = vmatpush1.xpose.msra.mxu0 0.0
      %208 = vmatprep.subr.mxu0 0.0
      %209 = vmatpush1.xpose.msra.mxu0 0.0
      %210 = vmatprep.subr.mxu0 0.0
      %211 = vmatpush1.xpose.msra.mxu0 %v184
      %212 = vmatprep.subr.mxu0 0.0
      %213 = vmatpush1.xpose.msra.mxu0 %v181
      %214 = vmatprep.subr.mxu0 0.0
      %215 = vmatpush1.xpose.msra.mxu0 %v178
      %216 = vmatprep.subr.mxu0 0.0
      %217 = vmatpush1.xpose.msra.mxu0 %v175
      %218 = vmatprep.subr.mxu0 0.0
      %219 = vmatpush2.xpose.msra.mxu0 0.0
      %220 = vmatprep.subr.mxu0 0.0
      %221 = vmatpush2.xpose.msra.mxu0 0.0
      %222 = vmatprep.subr.mxu0 0.0
      %223 = vmatpush2.xpose.msra.mxu0 0.0
      %224 = vmatprep.subr.mxu0 0.0
      %225 = vmatpush2.xpose.msra.mxu0 0.0
      %226 = vmatprep.subr.mxu0 0.0
      %227 = vmatpush2.xpose.msra.mxu0 0.0
      %228 = vmatprep.subr.mxu0 0.0
      %229 = vmatpush2.xpose.msra.mxu0 0.0
      %230 = vmatprep.subr.mxu0 0.0
      %231 = vmatpush2.xpose.msra.mxu0 0.0
      %232 = vmatprep.subr.mxu0 0.0
      %233 = vmatpush2.xpose.msra.mxu0 0.0
      %234 = vmatprep.subr.mxu0 0.0
      %235 = vmatpush2.xpose.msra.mxu0 0.0
      %236 = vmatprep.subr.mxu0 0.0
      %237 = vmatpush2.xpose.msra.mxu0 0.0
      %238 = vmatprep.subr.mxu0 0.0
      %239 = vmatpush2.xpose.msra.mxu0 0.0
      %240 = vmatprep.subr.mxu0 0.0
      %241 = vmatpush2.xpose.msra.mxu0 0.0
      %242 = vmatprep.subr.mxu0 0.0
      %243 = vmatpush2.xpose.msra.mxu0 0.0
      %244 = vmatprep.subr.mxu0 0.0
      %245 = vmatpush2.xpose.msra.mxu0 0.0
      %246 = vmatprep.subr.mxu0 0.0
      %247 = vmatpush2.xpose.msra.mxu0 0.0
      %248 = vmatprep.subr.mxu0 0.0
      %249 = vmatpush2.xpose.msra.mxu0 0.0
      %250 = vmatprep.mubr.f32.mxu0 0.0
      %251 = vmatmul.mubr.f32.gmra.mxu0 %v172
      %v252 = vpop.f32.mrf.mxu0
      %v253 = vadd.f32 0.0, %v252
      %v254 = vpop.f32.mrf.mxu0
      %255 = vdwg.mxu0
      %v256 = vadd.f32 %v168, %v253
      %257 = vst.msk [vmem:[#allocation2] sm:$0xff] %vm170, %v256
    $region33: #{tpu_custom_call.1} parent=1 // pred_fallthru
      _
    // Predicated region
    $region34: #{tpu_custom_call.1} parent=1 // pred_check
      %p258 = pneg %p41
    $region35: #{tpu_custom_call.1} parent=1 // pred_check_branch
      %260 = sbr.rel (%p258) target = $region37
    $region36: #{tpu_custom_call.1} parent=1 // pred_region
      %v261 = vld [vmem:[#allocation2] sm:$0xff]
      %v262 = vld [vmem:[%s2] sm:$0x1]
      %v264 = vlaneseq
      %v265 = vshrl.u32 %v264, 7
      %v266 = vsub.s32 0, %v265
      %v267 = vrot.slane %v262, %v266
      %v269 = vadd.f32 %v261, %v267
      %vm270 = vcmask 261120
      %271 = vst.msk [vmem:[#allocation8] sm:$0xff] %vm270, %v269
    $region37: #{tpu_custom_call.1} parent=1 // pred_fallthru
      _
    // Predicated region
    $region38: #{tpu_custom_call.1} parent=1 // pred_check
      _
    $region39: #{tpu_custom_call.1} parent=1 // pred_check_branch
      %273 = sbr.rel (0) target = $region41
    $region40: #{tpu_custom_call.1} parent=1 // pred_region
      %s275 = ssub.s32 128, 128
      %276 = vsyncadd [#allocation5], %s275
      %s278 = sshll.u32 [#allocation8], 4
      %s279 = int_to_ptr.vmem [resolvable:$true] %s278
      %281 = dma.vmem_to_hbm [thread:$0]  %s279, 128, %s3, [#allocation5]
    $region41: #{tpu_custom_call.1} parent=1 // pred_fallthru
      _
    // Predicated region
    $region42: #{tpu_custom_call.1} parent=1 // pred_check
      _
    $region43: #{tpu_custom_call.1} parent=1 // pred_check_branch
      %283 = sbr.rel (0) target = $region45
    $region44: #{tpu_custom_call.1} parent=1 // pred_region
      %284 = dma.done [#allocation5], 128
    $region45: #{tpu_custom_call.1} parent=1 // pred_fallthru
      _
    %285 = vsyncpa [#allocation4], 1
    %286 = vsyncpa [#allocation7], 1
    %287 = vsyncpa [#allocation5], 1

</llo_original>
